<compile_context>
chip_gen: v6e
topology: v6e:2x2x1
jax: 0.10.0
libtpu: 0.0.40
codegen_flags: <defaults>
</compile_context>

<pallas_src>
import functools

import jax
import jax.numpy as jnp
from jax.experimental import pallas as pl
from jax.experimental.pallas import tpu as pltpu

_LANE = 128
# Below this many elements, a pallas_call is pure dispatch overhead -> plain JAX.
_MIN_PALLAS_ELEMS = 1 << 18              # 256K elements (1 MiB of f32)
# Per-buffer VMEM tile target. 4 live buffers (2x in + 2x out, double-buffered)
# -> ~16 MiB live, inside the explicit 32 MiB scoped limit on every chip.
_TARGET_TILE_BYTES = 4 * 1024 * 1024
# Explicit scoped-VMEM limit: > v5e's 16 MiB default, <= v6e/v7x defaults,
# and well under v7x's 64 MiB physical VMEM.
_VMEM_LIMIT_BYTES = 32 * 1024 * 1024


def _sublane_multiple(itemsize: int) -> int:
    """Packed-tile second-minor dim: f32 -> 8, bf16/f16 -> 16, int8/fp8 -> 32."""
    return 8 * max(1, 4 // max(itemsize, 1))


def _gelu_exact(x):
    """Exact erf GELU == torch.nn.functional.gelu(..., approximate='none')."""
    xf = x.astype(jnp.float32)
    y = 0.5 * xf * (1.0 + jax.lax.erf(xf * jnp.float32(0.7071067811865476)))
    return y.astype(x.dtype)


def _gelu_kernel(x_ref, o_ref):
    # Compute in f32 regardless of storage dtype (robust for bf16 inputs).
    o_ref[...] = _gelu_exact(x_ref[...]).astype(o_ref.dtype)


def _choose_tiles(n_elems: int, itemsize: int):
    """Pick (lane_width, tile_rows) for an elementwise slab of n_elems."""
    sub = _sublane_multiple(itemsize)
    # Widest lane-dense width the data can fill with at least one packed row
    # block: wide output slabs -> unmasked full-width vector stores and large
    # contiguous DMA descriptors.
    lane_width = _LANE
    for w in (8192, 4096, 2048, 1024, 512, 256, 128):
        if n_elems >= w * sub:
            lane_width = w
            break
    rows = n_elems // lane_width
    if rows <= sub:
        # Tiny (forced) path: one full-array block, grid of size 1.
        return lane_width, rows

    # ~4 MiB per live buffer amortizes the ~0.35 us per-grid-step overhead
    # while keeping 2x(in)+2x(out) double-buffered tiles ~16 MiB on all chips.
    target_rows = max(sub, _TARGET_TILE_BYTES // (lane_width * itemsize))
    tile_rows = min(target_rows, rows)
    tile_rows = max(sub, (tile_rows // sub) * sub)
    # Guarantee >= 4 pipeline steps when the data allows: keeps DMA/compute
    # overlapped for medium inputs and feeds both v7x TensorCores.
    while tile_rows > sub and pl.cdiv(rows, tile_rows) < 4:
        tile_rows = max(sub, ((tile_rows // 2) // sub) * sub)
    return lane_width, tile_rows


@functools.partial(jax.jit, static_argnames=("force_pallas",), donate_argnums=(0,))
def _functional2layer_gelu_impl(x, *, force_pallas=False):
    n = x.size
    orig_shape = x.shape
    if n == 0:
        return x

    if not force_pallas and n < _MIN_PALLAS_ELEMS:
        # Tiny tensor: let XLA fuse the elementwise GELU (no kernel launch).
        return _gelu_exact(x)

    itemsize = jnp.dtype(x.dtype).itemsize
    lane_width, tile_rows = _choose_tiles(n, itemsize)
    rows = n // lane_width
    if rows == 0:
        # Sub-128-element tensor even when forced: nothing to tile.
        return _gelu_exact(x)

    n_main = rows * lane_width
    flat = x.reshape(-1)
    # No full-array pad: the aligned bulk goes through Pallas; any <128-element
    # tail is handled by XLA below on a slice.
    x2d = (flat if n_main == n else flat[:n_main]).reshape(rows, lane_width)

    out2d = pl.pallas_call(
        _gelu_kernel,
        out_shape=jax.ShapeDtypeStruct((rows, lane_width), x.dtype),
        grid=(pl.cdiv(rows, tile_rows),),      # partial last row-block masked by Pallas
        in_specs=[pl.BlockSpec((tile_rows, lane_width), lambda i: (i, 0))],
        out_specs=pl.BlockSpec((tile_rows, lane_width), lambda i: (i, 0)),
        compiler_params=pltpu.CompilerParams(
            dimension_semantics=("parallel",),  # shard row-tiles across TCs on v7x
            vmem_limit_bytes=_VMEM_LIMIT_BYTES,
        ),
        input_output_aliases={0: 0},            # write output in place
    )(x2d)

    out = out2d.reshape(-1)
    if n_main != n:
        # Ragged tail (< lane_width elements): plain XLA on the slice.
        tail = _gelu_exact(flat[n_main:])
        out = jnp.concatenate([out, tail])
    return out.reshape(orig_shape)


def functional2layer_gelu(x: jax.Array, *, force_pallas: bool = False) -> jax.Array:
    """Pallas implementation of Functional2Layer(F.gelu).forward(x).

    Note: the input buffer is donated (reused for the output); do not reuse `x`
    after calling.
    """
    return _functional2layer_gelu_impl(x, force_pallas=force_pallas)


def _gelu_reference(x: jax.Array) -> jax.Array:
    xf = x.astype(jnp.float32)
    return (0.5 * xf * (1.0 + jax.lax.erf(xf / jnp.sqrt(jnp.float32(2.0))))).astype(x.dtype)


if __name__ == "__main__":
    key = jax.random.PRNGKey(0)
    k1, k2, k3, k4 = jax.random.split(key, 4)

    # 1) Small NCHW input consistent with the module's usage (batch=2, C=4, 16x16).
    #    Forced through the Pallas path to exercise the kernel itself.
    x_small = jax.random.normal(k1, (2, 4, 16, 16), dtype=jnp.float32)
    ref_small = _gelu_reference(x_small)              # compute before donation
    out_small = jax.block_until_ready(functional2layer_gelu(x_small, force_pallas=True))
    assert out_small.shape == ref_small.shape and out_small.dtype == ref_small.dtype
    assert jnp.allclose(out_small, ref_small, atol=1e-5, rtol=1e-5), "small-input mismatch"

    # 2) Ragged element count -> exercises the no-pad bulk+tail path
    #    (partial Pallas row-block + XLA tail).
    x_ragged = jax.random.normal(k2, (3, 5, 7, 11), dtype=jnp.float32)
    ref_ragged = _gelu_reference(x_ragged)
    out_ragged = jax.block_until_ready(functional2layer_gelu(x_ragged, force_pallas=True))
    assert jnp.allclose(out_ragged, ref_ragged, atol=1e-5, rtol=1e-5), "ragged mismatch"

    # 3) Larger f32 activation -> wide 8192-lane slab, 4 MiB row tiles, 4 grid
    #    steps, double-buffered pipeline.
    x_big = jax.random.normal(k3, (8, 32, 128, 128), dtype=jnp.float32)
    ref_big = _gelu_reference(x_big)
    out_big = jax.block_until_ready(functional2layer_gelu(x_big))
    assert jnp.allclose(out_big, ref_big, atol=1e-5, rtol=1e-5), "large-input mismatch"

    # 4) bf16 activation -> exercises dtype-aware sublane rounding (multiple of 16).
    x_bf16 = jax.random.normal(k4, (4, 64, 128, 128), dtype=jnp.bfloat16)
    ref_bf16 = _gelu_reference(x_bf16)
    out_bf16 = jax.block_until_ready(functional2layer_gelu(x_bf16))
    assert out_bf16.dtype == jnp.bfloat16
    assert jnp.allclose(out_bf16.astype(jnp.float32), ref_bf16.astype(jnp.float32),
                        atol=1e-2, rtol=1e-2), "bf16 mismatch"

    print("KERNEL_OK")
</pallas_src>

<mosaic_0001>
module attributes {stable_mosaic.version = 11 : i64} {
  func.func @_gelu_kernel(%arg0: i32, %arg1: memref<8x256xf32, #tpu.memory_space<vmem>>, %arg2: memref<8x256xf32, #tpu.memory_space<vmem>>) attributes {dimension_semantics = [#tpu.dimension_semantics<parallel>], iteration_bounds = array<i64: 1>, scalar_prefetch = 0 : i64, scratch_operands = 0 : i64, tpu.core_type = #tpu.core_type<tc>, window_params = [{transform_indices = @transform_0, window_bounds = array<i64: 8, 256>}, {transform_indices = @transform_1, window_bounds = array<i64: 8, 256>}]} {
    %c0 = arith.constant 0 : index
    %c0_0 = arith.constant 0 : index
    %0 = vector.load %arg1[%c0, %c0_0] : memref<8x256xf32, #tpu.memory_space<vmem>>, vector<8x256xf32>
    %cst = arith.constant 5.000000e-01 : f32
    %1 = vector.broadcast %cst : f32 to vector<8x256xf32>
    %2 = arith.mulf %1, %0 : vector<8x256xf32>
    %cst_1 = arith.constant 0.707106769 : f32
    %3 = vector.broadcast %cst_1 : f32 to vector<8x256xf32>
    %4 = arith.mulf %0, %3 : vector<8x256xf32>
    %5 = math.erf %4 : vector<8x256xf32>
    %cst_2 = arith.constant 1.000000e+00 : f32
    %6 = vector.broadcast %cst_2 : f32 to vector<8x256xf32>
    %7 = arith.addf %6, %5 : vector<8x256xf32>
    %8 = arith.mulf %2, %7 : vector<8x256xf32>
    %c0_3 = arith.constant 0 : index
    %c0_4 = arith.constant 0 : index
    %9 = vector.load %arg2[%c0_3, %c0_4] : memref<8x256xf32, #tpu.memory_space<vmem>>, vector<8x256xf32>
    tpu.vector_store %arg2[%c0_3, %c0_4], %8 {strides = array<i32>} : memref<8x256xf32, #tpu.memory_space<vmem>>, vector<8x256xf32>,
    return
  }
  func.func @transform_0(%arg0: i32) -> (i32, i32) {
    %c0_i32 = arith.constant 0 : i32
    %c0_i32_0 = arith.constant 0 : i32
    return %arg0, %c0_i32 : i32, i32
  }
  func.func @transform_1(%arg0: i32) -> (i32, i32) {
    %c0_i32 = arith.constant 0 : i32
    %c0_i32_0 = arith.constant 0 : i32
    return %arg0, %c0_i32 : i32, i32
  }
}

</mosaic_0001>

<llo_original>
// kernel: _functional2layer_gelu_impl.1
$region0: #{_functional2layer_gelu_impl.1}
  #allocation0 [shape = 'u32[]', space=smem, size = 0x4, offset = 0x4, fixed_abs, tag = 'smem constant byte address 0x4 - core index']
  #allocation1 [shape = 'u32[144,128]{1,0:T(1,128)}', space=vmem, size = 0x12000, scoped, tag = 'internal scratch']
  %s0 = inlined_call_operand.vmem [shape: f32[8,256], index: 0, kind: input, shape index: {}, may-alias: {0,1}]
  %s1 = inlined_call_operand.vmem [shape: f32[8,256], index: 1, kind: output, shape index: {}, may-alias: {0,1}]
  %s2 = sld [smem:[#allocation0]]
  $region14: #{_functional2layer_gelu_impl.1} parent=0
    _
  %s4 = ssub.s32 1, %s2
  %s5 = scalar_select 0, %s4, %s2
  // Predicated region
  $region2: #{_functional2layer_gelu_impl.1} parent=0 // pred_check
    _
  $region3: #{_functional2layer_gelu_impl.1} parent=0 // pred_check_branch
    %7 = sbr.rel (0) target = $region5
  $region4: #{_functional2layer_gelu_impl.1} parent=0 // pred_region
    _
  $region5: #{_functional2layer_gelu_impl.1} parent=0 // pred_fallthru
    _
  %v8 = vld [vmem:[%s0] sm:$0xff]
  %v9 = vld [vmem:[%s0 + $0x8] sm:$0xff]
  %v10 = vmul.f32 %v8, 0.5
  %v11 = vmul.f32 %v9, 0.5
  %v12 = vmul.f32 %v8, 0.70710677
  %v13 = vmul.f32 %v9, 0.70710677
  %v14 = verf.f32.pop %v12
  %v15 = verf.f32.pop %v13
  %v16 = vadd.f32 %v14, 1.0
  %v17 = vadd.f32 %v15, 1.0
  %v18 = vmul.f32 %v10, %v16
  %v19 = vmul.f32 %v11, %v17
  %20 = vst [vmem:[%s1] sm:$0xff] %v18
  %21 = vst [vmem:[%s1 + $0x8] sm:$0xff] %v19
  // Predicated region
  $region6: #{_functional2layer_gelu_impl.1} parent=0 // pred_check
    _
  $region7: #{_functional2layer_gelu_impl.1} parent=0 // pred_check_branch
    %23 = sbr.rel (0) target = $region9
  $region8: #{_functional2layer_gelu_impl.1} parent=0 // pred_region
    _
  $region9: #{_functional2layer_gelu_impl.1} parent=0 // pred_fallthru
    _
  // Predicated region
  $region10: #{_functional2layer_gelu_impl.1} parent=0 // pred_check
    _
  $region11: #{_functional2layer_gelu_impl.1} parent=0 // pred_check_branch
    %25 = sbr.rel (0) target = $region13
  $region12: #{_functional2layer_gelu_impl.1} parent=0 // pred_region
    _
  $region13: #{_functional2layer_gelu_impl.1} parent=0 // pred_fallthru
    _

</llo_original>
